<compile_context>
chip_gen: v7x
topology: tpu7x:2x2x1
jax: 0.10.0
libtpu: 0.0.40
codegen_flags: <defaults>
</compile_context>

<pallas_src>
import jax
import jax.numpy as jnp
from jax import lax
from jax.experimental import pallas as pl
from jax.experimental.pallas import tpu as pltpu

LANES = 128
SUBLANES = 8
PAD_MULT = 32 * LANES  # flat padding granularity -> rows multiple of 32 (8-bit-gt tile safe)


def _make_hloss_kernel(rows, tile_rows, num_blocks, tiles_per_core, cores_used):
    """Builds the tiled HLoss kernel body with static constants baked in."""
    # Static (trace-time) structure decisions -> no hot-path cost when unneeded.
    has_ragged_rows = (rows % tile_rows) != 0                # last real tile partial
    has_overrun = (cores_used * tiles_per_core) != num_blocks  # clamped re-read tile

    def kernel(x_ref, gt_ref, sum_ref, cnt_ref, acc_sum, acc_cnt):
        c = pl.program_id(0)  # core split axis
        t = pl.program_id(1)  # row-tile axis (reduction, carries accumulators)
        blk = c * tiles_per_core + t

        # Zero the per-core accumulators at the start of each core's sweep.
        @pl.when(t == 0)
        def _():
            acc_sum[...] = jnp.zeros_like(acc_sum)
            acc_cnt[...] = jnp.zeros_like(acc_cnt)

        def accumulate():
            # Elementwise hot path: exp on EUP, mul/select on VPU (upcast in-kernel).
            x = x_ref[...].astype(jnp.float32)
            b = -jnp.exp(x) * x

            # ignore_index selection (PyTorch module hard-codes 255).  Ragged flat
            # tail is already rejected because gt is zero-padded in the wrapper.
            sel = gt_ref[...] == 255

            if has_ragged_rows:
                # Only the final partial BlockSpec tile can read garbage rows past
                # `rows`; mask them out.  Emitted only when rows % tile_rows != 0.
                row_idx = lax.broadcasted_iota(jnp.int32, (tile_rows, LANES), 0)
                sel = jnp.logical_and(sel, (blk * tile_rows + row_idx) < rows)

            contrib = jnp.where(sel, b, 0.0)

            # Per-lane partial accumulation: group sublanes by 8 and reduce the
            # leading axis -> pure vreg adds (VPU), no cross-lane XLU work per step.
            acc_sum[...] += contrib.reshape(
                tile_rows // SUBLANES, SUBLANES, LANES).sum(axis=0)
            acc_cnt[...] += sel.astype(jnp.float32).reshape(
                tile_rows // SUBLANES, SUBLANES, LANES).sum(axis=0)

        if has_overrun:
            # Clamped overrun tile (index_map min-clamp) must not double-count.
            @pl.when(blk < num_blocks)
            def _():
                accumulate()
        else:
            accumulate()

        # Finalize once per core: lane-dense (8,128) partials out to HBM.
        @pl.when(t == tiles_per_core - 1)
        def _():
            sum_ref[0] = acc_sum[...]
            cnt_ref[0] = acc_cnt[...]

    return kernel


def hloss(x, gt, ignore_index=255, *, tile_rows=8192, n_cores=1, core_parallel=False):
    """Pallas implementation of HLoss.forward.

    x:  float array (any shape), gt: integer array of the same shape (uint8/int32).
    Returns scalar float32: mean of (-exp(x)*x) over elements where gt == 255
    (NaN if no element matches, same as torch's mean over an empty selection).

    For v7x pass n_cores=2, core_parallel=True to shard across both TensorCores.
    Note: like the PyTorch module, the 255 ignore value is hard-coded; the
    `ignore_index` argument is accepted but unused.
    """
    assert x.shape == gt.shape
    assert tile_rows % 32 == 0

    n = int(x.size)
    n_pad = ((n + PAD_MULT - 1) // PAD_MULT) * PAD_MULT

    x_flat = jnp.ravel(x)    # keep native dtype (no wrapper upcast pass)
    gt_flat = jnp.ravel(gt)  # keep native (possibly narrow) dtype
    if n_pad != n:
        # Pad values: x -> 0 contributes 0; gt -> 0 (!= 255) is never selected.
        x_flat = jnp.pad(x_flat, (0, n_pad - n))
        gt_flat = jnp.pad(gt_flat, (0, n_pad - n))

    rows = n_pad // LANES                    # multiple of 32
    x2 = x_flat.reshape(rows, LANES)
    gt2 = gt_flat.reshape(rows, LANES)

    tr = min(tile_rows, rows)                # still a multiple of 32
    num_blocks = pl.cdiv(rows, tr)
    cores_used = max(1, min(n_cores, num_blocks))
    tiles_per_core = pl.cdiv(num_blocks, cores_used)
    has_overrun = cores_used * tiles_per_core != num_blocks

    if has_overrun:
        def in_index_map(c, t):
            # Clamp so the DMA window never starts past the array; the overrun
            # tile's accumulate is gated off inside the kernel.
            return (jnp.minimum(c * tiles_per_core + t, num_blocks - 1), 0)
    else:
        def in_index_map(c, t):
            return (c * tiles_per_core + t, 0)

    def out_index_map(c, t):
        return (c, 0, 0)

    kernel = _make_hloss_kernel(rows, tr, num_blocks, tiles_per_core, cores_used)

    if cores_used > 1:
        core_sem = pltpu.CORE_PARALLEL if core_parallel else "parallel"
    else:
        core_sem = "arbitrary"   # size-1 axis: no fake split, simplest pipeline

    sum_part, cnt_part = pl.pallas_call(
        kernel,
        out_shape=(
            jax.ShapeDtypeStruct((cores_used, SUBLANES, LANES), jnp.float32),
            jax.ShapeDtypeStruct((cores_used, SUBLANES, LANES), jnp.float32),
        ),
        grid_spec=pltpu.PrefetchScalarGridSpec(
            num_scalar_prefetch=0,
            grid=(cores_used, tiles_per_core),
            in_specs=[
                pl.BlockSpec((tr, LANES), in_index_map),
                pl.BlockSpec((tr, LANES), in_index_map),
            ],
            out_specs=(
                pl.BlockSpec((1, SUBLANES, LANES), out_index_map),
                pl.BlockSpec((1, SUBLANES, LANES), out_index_map),
            ),
            scratch_shapes=[
                pltpu.VMEM((SUBLANES, LANES), jnp.float32),
                pltpu.VMEM((SUBLANES, LANES), jnp.float32),
            ],
        ),
        compiler_params=pltpu.CompilerParams(
            dimension_semantics=(core_sem, "arbitrary"),
            vmem_limit_bytes=32 * 1024 * 1024,
        ),
    )(x2, gt2)

    total = jnp.sum(sum_part)
    count = jnp.sum(cnt_part)
    # Division by zero -> NaN, matching torch's mean() over an empty selection.
    # Note: f32 count/sum accumulation is exact only up to ~2^24 per lane cell.
    return (total / count).astype(jnp.float32)


def hloss_reference(x, gt, ignore_index=255):
    xf = x.astype(jnp.float32)
    b = -jnp.exp(xf) * xf
    mask = gt == 255
    return jnp.sum(jnp.where(mask, b, 0.0)) / jnp.sum(mask.astype(jnp.float32))


if __name__ == "__main__":
    key = jax.random.PRNGKey(0)
    kx, kg = jax.random.split(key)

    B, C, H, W = 2, 4, 16, 16
    # x plays the role of (log-)scores; small values keep exp() well-behaved
    x = jax.random.normal(kx, (B, C, H, W), dtype=jnp.float32) * 0.5
    # gt: same shape as x, some entries equal to the ignore value 255
    gt = jnp.where(
        jax.random.uniform(kg, (B, C, H, W)) < 0.3,
        jnp.full((B, C, H, W), 255, dtype=jnp.int32),
        jax.random.randint(kg, (B, C, H, W), 0, 20, dtype=jnp.int32),
    )

    out = hloss(x, gt)
    out = jax.block_until_ready(out)

    ref = hloss_reference(x, gt)
    assert jnp.allclose(out, ref, rtol=1e-5, atol=1e-6), (out, ref)

    print("KERNEL_OK")
</pallas_src>

<mosaic_0001>
module attributes {stable_mosaic.version = 11 : i64} {
  func.func @kernel(%arg0: i32, %arg1: i32, %arg2: memref<32x128xf32, #tpu.memory_space<vmem>>, %arg3: memref<32x128xi32, #tpu.memory_space<vmem>>, %arg4: memref<1x8x128xf32, #tpu.memory_space<vmem>>, %arg5: memref<1x8x128xf32, #tpu.memory_space<vmem>>, %arg6: memref<8x128xf32, #tpu.memory_space<vmem>>, %arg7: memref<8x128xf32, #tpu.memory_space<vmem>>) attributes {dimension_semantics = [#tpu.dimension_semantics<arbitrary>, #tpu.dimension_semantics<arbitrary>], iteration_bounds = array<i64: 1, 1>, scalar_prefetch = 0 : i64, scratch_operands = 2 : i64, tpu.core_type = #tpu.core_type<tc>, window_params = [{transform_indices = @transform_0, window_bounds = array<i64: 32, 128>}, {transform_indices = @transform_1, window_bounds = array<i64: 32, 128>}, {transform_indices = @transform_2, window_bounds = array<i64: 1, 8, 128>}, {transform_indices = @transform_3, window_bounds = array<i64: 1, 8, 128>}]} {
    %c0_i32 = arith.constant 0 : i32
    %0 = arith.cmpi eq, %arg1, %c0_i32 : i32
    %1 = arith.extui %0 : i1 to i32
    %c0_i32_0 = arith.constant 0 : i32
    %2 = arith.cmpi ne, %1, %c0_i32_0 : i32
    scf.if %2 {
      %cst_17 = arith.constant 0.000000e+00 : f32
      %28 = vector.broadcast %cst_17 : f32 to vector<8x128xf32>
      %c0_18 = arith.constant 0 : index
      %c0_19 = arith.constant 0 : index
      %29 = vector.load %arg6[%c0_18, %c0_19] : memref<8x128xf32, #tpu.memory_space<vmem>>, vector<8x128xf32>
      tpu.vector_store %arg6[%c0_18, %c0_19], %28 {strides = array<i32>} : memref<8x128xf32, #tpu.memory_space<vmem>>, vector<8x128xf32>,
      %cst_20 = arith.constant 0.000000e+00 : f32
      %30 = vector.broadcast %cst_20 : f32 to vector<8x128xf32>
      %c0_21 = arith.constant 0 : index
      %c0_22 = arith.constant 0 : index
      %31 = vector.load %arg7[%c0_21, %c0_22] : memref<8x128xf32, #tpu.memory_space<vmem>>, vector<8x128xf32>
      tpu.vector_store %arg7[%c0_21, %c0_22], %30 {strides = array<i32>} : memref<8x128xf32, #tpu.memory_space<vmem>>, vector<8x128xf32>,
    } else {
    }
    %c0 = arith.constant 0 : index
    %c0_1 = arith.constant 0 : index
    %3 = vector.load %arg2[%c0, %c0_1] : memref<32x128xf32, #tpu.memory_space<vmem>>, vector<32x128xf32>
    %4 = math.exp %3 : vector<32x128xf32>
    %cst = arith.constant 0.000000e+00 : f32
    %5 = vector.broadcast %cst : f32 to vector<32x128xf32>
    %6 = arith.subf %5, %4 : vector<32x128xf32>
    %7 = arith.mulf %6, %3 : vector<32x128xf32>
    %c0_2 = arith.constant 0 : index
    %c0_3 = arith.constant 0 : index
    %8 = vector.load %arg3[%c0_2, %c0_3] : memref<32x128xi32, #tpu.memory_space<vmem>>, vector<32x128xi32>
    %c255_i32 = arith.constant 255 : i32
    %9 = vector.broadcast %c255_i32 : i32 to vector<32x128xi32>
    %10 = arith.cmpi eq, %8, %9 : vector<32x128xi32>
    %cst_4 = arith.constant 0.000000e+00 : f32
    %11 = vector.broadcast %cst_4 : f32 to vector<32x128xf32>
    %12 = arith.select %10, %7, %11 : vector<32x128xi1>, vector<32x128xf32>
    %c0_5 = arith.constant 0 : index
    %c0_6 = arith.constant 0 : index
    %13 = vector.load %arg6[%c0_5, %c0_6] : memref<8x128xf32, #tpu.memory_space<vmem>>, vector<8x128xf32>
    %14 = vector.shape_cast %12 : vector<32x128xf32> to vector<4x8x128xf32>
    %cst_7 = arith.constant dense<0.000000e+00> : vector<8x128xf32>
    %15 = vector.multi_reduction <add>, %14, %cst_7 [0] : vector<4x8x128xf32> to vector<8x128xf32>
    %16 = arith.addf %13, %15 : vector<8x128xf32>
    %c0_8 = arith.constant 0 : index
    %c0_9 = arith.constant 0 : index
    %17 = vector.load %arg6[%c0_8, %c0_9] : memref<8x128xf32, #tpu.memory_space<vmem>>, vector<8x128xf32>
    tpu.vector_store %arg6[%c0_8, %c0_9], %16 {strides = array<i32>} : memref<8x128xf32, #tpu.memory_space<vmem>>, vector<8x128xf32>,
    %c0_10 = arith.constant 0 : index
    %c0_11 = arith.constant 0 : index
    %18 = vector.load %arg7[%c0_10, %c0_11] : memref<8x128xf32, #tpu.memory_space<vmem>>, vector<8x128xf32>
    %19 = arith.extui %10 : vector<32x128xi1> to vector<32x128xi32>
    %20 = arith.sitofp %19 : vector<32x128xi32> to vector<32x128xf32>
    %21 = vector.shape_cast %20 : vector<32x128xf32> to vector<4x8x128xf32>
    %cst_12 = arith.constant dense<0.000000e+00> : vector<8x128xf32>
    %22 = vector.multi_reduction <add>, %21, %cst_12 [0] : vector<4x8x128xf32> to vector<8x128xf32>
    %23 = arith.addf %18, %22 : vector<8x128xf32>
    %c0_13 = arith.constant 0 : index
    %c0_14 = arith.constant 0 : index
    %24 = vector.load %arg7[%c0_13, %c0_14] : memref<8x128xf32, #tpu.memory_space<vmem>>, vector<8x128xf32>
    tpu.vector_store %arg7[%c0_13, %c0_14], %23 {strides = array<i32>} : memref<8x128xf32, #tpu.memory_space<vmem>>, vector<8x128xf32>,
    %c0_i32_15 = arith.constant 0 : i32
    %25 = arith.cmpi eq, %arg1, %c0_i32_15 : i32
    %26 = arith.extui %25 : i1 to i32
    %c0_i32_16 = arith.constant 0 : i32
    %27 = arith.cmpi ne, %26, %c0_i32_16 : i32
    scf.if %27 {
      %c0_17 = arith.constant 0 : index
      %c0_18 = arith.constant 0 : index
      %28 = vector.load %arg6[%c0_17, %c0_18] : memref<8x128xf32, #tpu.memory_space<vmem>>, vector<8x128xf32>
      %c0_19 = arith.constant 0 : index
      %c0_20 = arith.constant 0 : index
      %c0_21 = arith.constant 0 : index
      %29 = vector.load %arg4[%c0_19, %c0_20, %c0_21] : memref<1x8x128xf32, #tpu.memory_space<vmem>>, vector<1x8x128xf32>
      %30 = vector.shape_cast %29 : vector<1x8x128xf32> to vector<8x128xf32>
      %31 = vector.shape_cast %28 : vector<8x128xf32> to vector<1x8x128xf32>
      tpu.vector_store %arg4[%c0_19, %c0_20, %c0_21], %31 {strides = array<i32>} : memref<1x8x128xf32, #tpu.memory_space<vmem>>, vector<1x8x128xf32>,
      %c0_22 = arith.constant 0 : index
      %c0_23 = arith.constant 0 : index
      %32 = vector.load %arg7[%c0_22, %c0_23] : memref<8x128xf32, #tpu.memory_space<vmem>>, vector<8x128xf32>
      %c0_24 = arith.constant 0 : index
      %c0_25 = arith.constant 0 : index
      %c0_26 = arith.constant 0 : index
      %33 = vector.load %arg5[%c0_24, %c0_25, %c0_26] : memref<1x8x128xf32, #tpu.memory_space<vmem>>, vector<1x8x128xf32>
      %34 = vector.shape_cast %33 : vector<1x8x128xf32> to vector<8x128xf32>
      %35 = vector.shape_cast %32 : vector<8x128xf32> to vector<1x8x128xf32>
      tpu.vector_store %arg5[%c0_24, %c0_25, %c0_26], %35 {strides = array<i32>} : memref<1x8x128xf32, #tpu.memory_space<vmem>>, vector<1x8x128xf32>,
    } else {
    }
    return
  }
  func.func @transform_0(%arg0: i32, %arg1: i32) -> (i32, i32) {
    %c1_i32 = arith.constant 1 : i32
    %0 = arith.muli %arg0, %c1_i32 : i32
    %1 = arith.addi %0, %arg1 : i32
    %c0_i32 = arith.constant 0 : i32
    %c0_i32_0 = arith.constant 0 : i32
    return %1, %c0_i32 : i32, i32
  }
  func.func @transform_1(%arg0: i32, %arg1: i32) -> (i32, i32) {
    %c1_i32 = arith.constant 1 : i32
    %0 = arith.muli %arg0, %c1_i32 : i32
    %1 = arith.addi %0, %arg1 : i32
    %c0_i32 = arith.constant 0 : i32
    %c0_i32_0 = arith.constant 0 : i32
    return %1, %c0_i32 : i32, i32
  }
  func.func @transform_2(%arg0: i32, %arg1: i32) -> (i32, i32, i32) {
    %c0_i32 = arith.constant 0 : i32
    %c0_i32_0 = arith.constant 0 : i32
    %c0_i32_1 = arith.constant 0 : i32
    return %arg0, %c0_i32, %c0_i32_0 : i32, i32, i32
  }
  func.func @transform_3(%arg0: i32, %arg1: i32) -> (i32, i32, i32) {
    %c0_i32 = arith.constant 0 : i32
    %c0_i32_0 = arith.constant 0 : i32
    %c0_i32_1 = arith.constant 0 : i32
    return %arg0, %c0_i32, %c0_i32_0 : i32, i32, i32
  }
}

</mosaic_0001>

<llo_original>
// kernel: tpu_custom_call.1
$region0: #{tpu_custom_call.1}
  #allocation0 [shape = 'u32[]', space=smem, size = 0x4, offset = 0x4, fixed_abs, tag = 'smem constant byte address 0x4 - core index']
  #allocation1 [shape = 'u32[144,128]{1,0:T(1,128)}', space=vmem, size = 0x12000, scoped, tag = 'internal scratch']
  #allocation2 [shape = 'f32[8,128]{1,0:T(8,128)}', space=vmem, size = 0x1000, scoped, tag = 'scratch operand']
  #allocation3 [shape = 'f32[8,128]{1,0:T(8,128)}', space=vmem, size = 0x1000, scoped, tag = 'scratch operand']
  %s0 = inlined_call_operand.hbm [shape: f32[32,128], index: 0, kind: input, shape index: {}]
  %s1 = inlined_call_operand.hbm [shape: s32[32,128], index: 1, kind: input, shape index: {}]
  %s2 = inlined_call_operand.hbm [shape: f32[1,8,128], index: 2, kind: output, shape index: {0}]
  %s3 = inlined_call_operand.hbm [shape: f32[1,8,128], index: 3, kind: output, shape index: {1}]
  %4 = xla_tuple %s2, %s3
  %s5 = sld [smem:[#allocation0]]
  $region42: #{tpu_custom_call.1} parent=0
    _
  %s7 = ssub.s32 1, %s5
  %s8 = scalar_select 0, %s7, %s5
  $region1: #{tpu_custom_call.1} parent=0
    #allocation4 [shape = 'u8[16384]{0}', space=vmem, size = 0x4000, scoped, tag = 'input window, operand 0, single buffered']
    #allocation5 [shape = 's32[1]{0}', space=sflag, size = 0x4, scoped, tag = 'scoped memory for tpu_custom_call.1']
    #allocation6 [shape = 's32[1]{0}', space=sflag, size = 0x4, scoped, tag = 'scoped memory for tpu_custom_call.1']
    #allocation7 [shape = 'u8[16384]{0}', space=vmem, size = 0x4000, scoped, tag = 'input window, operand 1, single buffered']
    #allocation8 [shape = 's32[1]{0}', space=sflag, size = 0x4, scoped, tag = 'scoped memory for tpu_custom_call.1']
    #allocation9 [shape = 'u8[4096]{0}', space=vmem, size = 0x1000, scoped, tag = 'output window, operand 0, single buffered']
    #allocation10 [shape = 'u8[4096]{0}', space=vmem, size = 0x1000, scoped, tag = 'output window, operand 1, single buffered']
    #allocation11 [shape = 's32[1]{0}', space=sflag, size = 0x4, scoped, tag = 'scoped memory for tpu_custom_call.1']
    %9 = vsyncpa [#allocation5], 0
    %10 = vsyncpa [#allocation8], 0
    %11 = vsyncpa [#allocation6], 0
    %12 = vsyncpa [#allocation11], 0
    // Predicated region
    $region2: #{tpu_custom_call.1} parent=1 // pred_check
      _
    $region3: #{tpu_custom_call.1} parent=1 // pred_check_branch
      %14 = sbr.rel (0) target = $region5
    $region4: #{tpu_custom_call.1} parent=1 // pred_region
      %s15 = sadd.s32 0, 0
      %s16 = smul.u32 4, %s15
      %s18 = ssub.s32 512, 512
      %19 = vsyncadd [#allocation5], %s18
      %s20 = smul.addr %s16, 128
      %s21 = scalar_lea.hbm %s0, %s20
      %s22 = sshll.u32 [#allocation4], 4
      %s23 = int_to_ptr.vmem [resolvable:$true] %s22
      %28 = dma.hbm_to_vmem [thread:$0]  %s21, 512, %s23, [#allocation5], 128, 128, 8
    $region5: #{tpu_custom_call.1} parent=1 // pred_fallthru
      _
    // Predicated region
    $region6: #{tpu_custom_call.1} parent=1 // pred_check
      _
    $region7: #{tpu_custom_call.1} parent=1 // pred_check_branch
      %30 = sbr.rel (0) target = $region9
    $region8: #{tpu_custom_call.1} parent=1 // pred_region
      %s31 = sadd.s32 0, 0
      %s32 = smul.u32 4, %s31
      %s34 = ssub.s32 512, 512
      %35 = vsyncadd [#allocation8], %s34
      %s36 = smul.addr %s32, 128
      %s37 = scalar_lea.hbm %s1, %s36
      %s38 = sshll.u32 [#allocation7], 4
      %s39 = int_to_ptr.vmem [resolvable:$true] %s38
      %44 = dma.hbm_to_vmem [thread:$0]  %s37, 512, %s39, [#allocation8], 128, 128, 8
    $region9: #{tpu_custom_call.1} parent=1 // pred_fallthru
      _
    // Predicated region
    $region10: #{tpu_custom_call.1} parent=1 // pred_check
      _
    $region11: #{tpu_custom_call.1} parent=1 // pred_check_branch
      %46 = sbr.rel (0) target = $region13
    $region12: #{tpu_custom_call.1} parent=1 // pred_region
      %47 = dma.done [#allocation5], 512
    $region13: #{tpu_custom_call.1} parent=1 // pred_fallthru
      _
    // Predicated region
    $region14: #{tpu_custom_call.1} parent=1 // pred_check
      _
    $region15: #{tpu_custom_call.1} parent=1 // pred_check_branch
      %49 = sbr.rel (0) target = $region17
    $region16: #{tpu_custom_call.1} parent=1 // pred_region
      %50 = dma.done [#allocation8], 512
    $region17: #{tpu_custom_call.1} parent=1 // pred_fallthru
      _
    %s51 = sadd.s32 0, 0
    %s52 = smul.u32 4, %s51
    %s53 = sadd.s32 0, 0
    %s54 = smul.u32 4, %s53
    %p55 = scmp.eq.s32.totalorder 0, 0
    // Predicated region
    $region18: #{tpu_custom_call.1} parent=1 // pred_check
      %p56 = pneg %p55
    $region19: #{tpu_custom_call.1} parent=1 // pred_check_branch
      %58 = sbr.rel (%p56) target = $region21
    $region20: #{tpu_custom_call.1} parent=1 // pred_region
      %59 = vst [vmem:[#allocation2] sm:$0xff] 0.0
      %60 = vst [vmem:[#allocation3] sm:$0xff] 0.0
    $region21: #{tpu_custom_call.1} parent=1 // pred_fallthru
      _
    %v61 = vld [vmem:[#allocation4] sm:$0xff]
    %v62 = vld [vmem:[#allocation4 + $0x8] sm:$0xff]
    %v63 = vld [vmem:[#allocation4 + $0x10] sm:$0xff]
    %v64 = vld [vmem:[#allocation4 + $0x18] sm:$0xff]
    %v65 = vmul.f32 %v61, 1.442695
    %v66 = vpow.pop %v65
    %v67 = vmul.f32 %v62, 1.442695
    %v68 = vpow.pop %v67
    %v69 = vmul.f32 %v63, 1.442695
    %v70 = vpow.pop %v69
    %v71 = vmul.f32 %v64, 1.442695
    %v72 = vpow.pop %v71
    %v73 = vsub.f32 0.0, %v66
    %v74 = vsub.f32 0.0, %v68
    %v75 = vsub.f32 0.0, %v70
    %v76 = vsub.f32 0.0, %v72
    %v77 = vmul.f32 %v73, %v61
    %v78 = vmul.f32 %v74, %v62
    %v79 = vmul.f32 %v75, %v63
    %v80 = vmul.f32 %v76, %v64
    %v81 = vld [vmem:[#allocation7] sm:$0xff]
    %v82 = vld [vmem:[#allocation7 + $0x8] sm:$0xff]
    %v83 = vld [vmem:[#allocation7 + $0x10] sm:$0xff]
    %v84 = vld [vmem:[#allocation7 + $0x18] sm:$0xff]
    %vm85 = vcmp.eq.s32.totalorder %v81, 255
    %vm86 = vcmp.eq.s32.totalorder %v82, 255
    %vm87 = vcmp.eq.s32.totalorder %v83, 255
    %vm88 = vcmp.eq.s32.totalorder %v84, 255
    %v89 = vsel %vm85, %v77, 0.0
    %v90 = vsel %vm86, %v78, 0.0
    %v91 = vsel %vm87, %v79, 0.0
    %v92 = vsel %vm88, %v80, 0.0
    %v93 = vld [vmem:[#allocation2] sm:$0xff]
    %v94 = vadd.f32 %v89, %v90
    %v95 = vadd.f32 %v94, %v91
    %v96 = vadd.f32 %v95, %v92
    %v97 = vadd.f32 %v93, %v96
    %98 = vst [vmem:[#allocation2] sm:$0xff] %v97
    %v99 = vld [vmem:[#allocation3] sm:$0xff]
    %v100 = vsel %vm85, 1, 0
    %v101 = vsel %vm86, 1, 0
    %v102 = vsel %vm87, 1, 0
    %v103 = vsel %vm88, 1, 0
    %v104 = vcvt.s32.f32 %v100
    %v105 = vcvt.s32.f32 %v101
    %v106 = vcvt.s32.f32 %v102
    %v107 = vcvt.s32.f32 %v103
    %v108 = vadd.f32 %v104, %v105
    %v109 = vadd.f32 %v108, %v106
    %v110 = vadd.f32 %v109, %v107
    %v111 = vadd.f32 %v99, %v110
    %112 = vst [vmem:[#allocation3] sm:$0xff] %v111
    // Predicated region
    $region22: #{tpu_custom_call.1} parent=1 // pred_check
      %p113 = pneg %p55
    $region23: #{tpu_custom_call.1} parent=1 // pred_check_branch
      %115 = sbr.rel (%p113) target = $region25
    $region24: #{tpu_custom_call.1} parent=1 // pred_region
      %v116 = vld [vmem:[#allocation2] sm:$0xff]
      %117 = vst [vmem:[#allocation9] sm:$0xff] %v116
      %v118 = vld [vmem:[#allocation3] sm:$0xff]
      %119 = vst [vmem:[#allocation10] sm:$0xff] %v118
    $region25: #{tpu_custom_call.1} parent=1 // pred_fallthru
      _
    // Predicated region
    $region26: #{tpu_custom_call.1} parent=1 // pred_check
      _
    $region27: #{tpu_custom_call.1} parent=1 // pred_check_branch
      %121 = sbr.rel (0) target = $region29
    $region28: #{tpu_custom_call.1} parent=1 // pred_region
      %s123 = ssub.s32 128, 128
      %124 = vsyncadd [#allocation6], %s123
      %s126 = sshll.u32 [#allocation9], 4
      %s127 = int_to_ptr.vmem [resolvable:$true] %s126
      %129 = dma.vmem_to_hbm [thread:$0]  %s127, 128, %s2, [#allocation6]
    $region29: #{tpu_custom_call.1} parent=1 // pred_fallthru
      _
    // Predicated region
    $region30: #{tpu_custom_call.1} parent=1 // pred_check
      _
    $region31: #{tpu_custom_call.1} parent=1 // pred_check_branch
      %131 = sbr.rel (0) target = $region33
    $region32: #{tpu_custom_call.1} parent=1 // pred_region
      %s133 = ssub.s32 128, 128
      %134 = vsyncadd [#allocation11], %s133
      %s136 = sshll.u32 [#allocation10], 4
      %s137 = int_to_ptr.vmem [resolvable:$true] %s136
      %139 = dma.vmem_to_hbm [thread:$0]  %s137, 128, %s3, [#allocation11]
    $region33: #{tpu_custom_call.1} parent=1 // pred_fallthru
      _
    // Predicated region
    $region34: #{tpu_custom_call.1} parent=1 // pred_check
      _
    $region35: #{tpu_custom_call.1} parent=1 // pred_check_branch
      %141 = sbr.rel (0) target = $region37
    $region36: #{tpu_custom_call.1} parent=1 // pred_region
      %142 = dma.done [#allocation6], 128
    $region37: #{tpu_custom_call.1} parent=1 // pred_fallthru
      _
    // Predicated region
    $region38: #{tpu_custom_call.1} parent=1 // pred_check
      _
    $region39: #{tpu_custom_call.1} parent=1 // pred_check_branch
      %144 = sbr.rel (0) target = $region41
    $region40: #{tpu_custom_call.1} parent=1 // pred_region
      %145 = dma.done [#allocation11], 128
    $region41: #{tpu_custom_call.1} parent=1 // pred_fallthru
      _
    %146 = vsyncpa [#allocation5], 1
    %147 = vsyncpa [#allocation8], 1
    %148 = vsyncpa [#allocation6], 1
    %149 = vsyncpa [#allocation11], 1

</llo_original>
